<compile_context>
chip_gen: v6e
topology: v6e:2x2x1
jax: 0.10.0
libtpu: 0.0.40
codegen_flags: <defaults>
</compile_context>

<pallas_src>
import functools

import numpy as np
import jax
import jax.numpy as jnp
from jax import lax
from jax.experimental import pallas as pl
from jax.experimental.pallas import tpu as pltpu


def _round_up(x, mult):
    return ((x + mult - 1) // mult) * mult


def _soft_shrink(z, theta):
    # sign(z) * max(|z| - theta, 0) == z - clip(z, -theta, theta)
    return z - jnp.clip(z, -theta, theta)


def _lista_kernel(y_ref, wt_ref, st_ref, x_ref, wy_ref, *, theta, max_iter, unroll):
    # y_ref:  (TB, m)        bf16   (pre-cast in wrapper)
    # wt_ref: (m, n_pad)     bf16   (VMEM resident)
    # st_ref: (n_pad, n_pad) bf16   (VMEM resident)
    # x_ref:  (TB, n_pad)    f32
    # wy_ref: (TB, n_pad)    f32 scratch (W y, reused every iteration)
    wy_ref[...] = jnp.dot(y_ref[...], wt_ref[...], preferred_element_type=jnp.float32)

    # first shrinkage step: x = shrink(W y)
    x = _soft_shrink(wy_ref[...], theta)

    if max_iter > 1:  # static python branch mirrors `if self.max_iter == 1: return x`
        st = st_ref[...]  # hoisted: resident bf16 S^T

        def body(_, x):
            z = wy_ref[...] + jnp.dot(
                x.astype(jnp.bfloat16), st, preferred_element_type=jnp.float32
            )
            return _soft_shrink(z, theta)

        x = lax.fori_loop(0, max_iter, body, x, unroll=unroll)

    x_ref[...] = x.astype(x_ref.dtype)


def _vmem_capacity_bytes():
    try:
        return int(pltpu.get_tpu_info().vmem_capacity_bytes)
    except Exception:
        return 64 << 20  # conservative fallback (v7x per-TC VMEM)


class LISTAPallas:
    """JAX/Pallas port of the PyTorch LISTA module."""

    def __init__(self, m, n, k, phi, lmbda):
        self.m = m
        self.n = n
        self.k = k
        self.lmbda = float(lmbda)

        phi = np.asarray(phi, dtype=np.float32)  # (m, n)
        self.L = float(np.max(np.real(np.linalg.eigvals(phi @ phi.T))))

        # LISTA parameters (deterministic, derived from phi)
        W = phi.T / self.L                                        # (n, m)
        S = np.eye(n, dtype=np.float32) - (phi.T @ phi) / self.L  # (n, n)
        self.theta = self.lmbda / self.L

        # lane-align n only (zero padding -> exact math); m stays unpadded
        self.n_pad = _round_up(n, 128)

        wt = np.zeros((m, self.n_pad), dtype=np.float32)
        wt[:, :n] = W.T                                           # (m, n) -> n-padded
        st = np.zeros((self.n_pad, self.n_pad), dtype=np.float32)
        st[:n, :n] = S.T                                          # (n, n) -> padded

        # bf16 weights: native MXU dtype, half the VMEM/HBM footprint
        self.wt = jnp.asarray(wt, dtype=jnp.bfloat16)             # (m, n_pad)
        self.st = jnp.asarray(st, dtype=jnp.bfloat16)             # (n_pad, n_pad)

    def __call__(self, y, info=None):
        # y: (batch, m) float32 -> x: (batch, n) float32
        y = jnp.asarray(y, dtype=jnp.float32)
        batch = y.shape[0]

        wt_bytes = self.m * self.n_pad * 2
        st_bytes = self.n_pad * self.n_pad * 2

        # generation-aware VMEM budget: physical capacity minus headroom
        vmem_cap = _vmem_capacity_bytes()
        usable = max(vmem_cap - (16 << 20), vmem_cap // 2)

        # per batch-row VMEM cost of a tile:
        #   y (bf16, 2 bufs) + x out (f32, 2 bufs) + wy scratch (f32) + loop x temp (f32)
        per_row = 2 * (self.m * 2) + 2 * (self.n_pad * 4) + self.n_pad * 4 + self.n_pad * 4
        # resident weights counted twice (worst case: compiler double-buffers them)
        tile_budget = usable - 2 * (wt_bytes + st_bytes) - (4 << 20)

        batch16 = _round_up(max(batch, 16), 16)
        if tile_budget > per_row * 16:
            tb_max = (tile_budget // per_row) // 16 * 16
        else:
            tb_max = 16
        tb = int(min(1024, tb_max, batch16))
        tb = max(16, (tb // 16) * 16)
        # megacore (v7x): prefer >= 2 grid steps whenever the batch is big enough
        if _round_up(batch, tb) // tb < 2 and batch16 >= 32:
            tb = max(16, _round_up(batch16 // 2, 16))
        batch_pad = _round_up(batch, tb)
        grid = (batch_pad // tb,)

        need = 2 * (wt_bytes + st_bytes) + tb * per_row
        vmem_bytes = int(min(usable, int(need * 1.5) + (8 << 20)))

        # pre-cast y to bf16 (halves y DMA + VMEM footprint) and pad batch only
        y_p = jnp.pad(y.astype(jnp.bfloat16), ((0, batch_pad - batch), (0, 0)))

        kernel = functools.partial(
            _lista_kernel,
            theta=self.theta,
            max_iter=self.k,
            unroll=max(1, min(self.k, 4)),  # partial unroll; no full unroll at large k
        )

        def run(single_buffer_weights):
            resident_kw = (
                dict(pipeline_mode=pl.Buffered(1)) if single_buffer_weights else {}
            )
            return pl.pallas_call(
                kernel,
                out_shape=jax.ShapeDtypeStruct((batch_pad, self.n_pad), jnp.float32),
                grid=grid,
                in_specs=[
                    pl.BlockSpec((tb, self.m), lambda i: (i, 0)),               # y tile
                    pl.BlockSpec((self.m, self.n_pad), lambda i: (0, 0),        # W^T
                                 **resident_kw),
                    pl.BlockSpec((self.n_pad, self.n_pad), lambda i: (0, 0),    # S^T
                                 **resident_kw),
                ],
                out_specs=pl.BlockSpec((tb, self.n_pad), lambda i: (i, 0)),     # x tile
                scratch_shapes=[pltpu.VMEM((tb, self.n_pad), jnp.float32)],     # W y
                compiler_params=pltpu.CompilerParams(
                    dimension_semantics=("parallel",),
                    vmem_limit_bytes=vmem_bytes,
                ),
            )(y_p, self.wt, self.st)

        try:
            out = run(single_buffer_weights=True)
        except Exception:
            # pipeline_mode=pl.Buffered(1) not supported on this JAX version:
            # fall back to default (double-buffered) resident weights.
            out = run(single_buffer_weights=False)

        return out[:batch, : self.n]


def _reference(y, wt_bf16, st_bf16, theta, max_iter):
    """Plain-JAX reference mirroring the kernel's bf16-input / f32-accum math."""
    wy = jnp.dot(
        y.astype(jnp.bfloat16), wt_bf16, preferred_element_type=jnp.float32
    )
    x = _soft_shrink(wy, theta)
    if max_iter > 1:
        for _ in range(max_iter):
            z = wy + jnp.dot(
                x.astype(jnp.bfloat16), st_bf16, preferred_element_type=jnp.float32
            )
            x = _soft_shrink(z, theta)
    return x


if __name__ == "__main__":
    m, n, k = 32, 64, 3
    batch = 8
    lmbda = 0.1

    key = jax.random.PRNGKey(0)
    k_phi, k_y = jax.random.split(key)

    # deterministic synthetic measurement matrix phi (m, n)
    phi = np.asarray(jax.random.normal(k_phi, (m, n), dtype=jnp.float32)) / np.sqrt(m)

    model = LISTAPallas(m, n, k, phi, lmbda)

    y = jax.random.normal(k_y, (batch, m), dtype=jnp.float32)

    x = model(y, info=None)
    x = jax.block_until_ready(x)

    # reference on the same bf16 operands, then sliced back to (batch, n)
    x_ref = _reference(jnp.asarray(y), model.wt, model.st, model.theta, k)[:batch, :n]
    np.testing.assert_allclose(
        np.asarray(x), np.asarray(x_ref), rtol=1e-2, atol=1e-2
    )

    print("KERNEL_OK")
</pallas_src>

<mosaic_0001>
module attributes {stable_mosaic.version = 11 : i64} {
  func.func @_lista_kernel(%arg0: i32, %arg1: memref<16x32xbf16, #tpu.memory_space<vmem>>, %arg2: memref<32x128xbf16, #tpu.memory_space<vmem>>, %arg3: memref<128x128xbf16, #tpu.memory_space<vmem>>, %arg4: memref<16x128xf32, #tpu.memory_space<vmem>>, %arg5: memref<16x128xf32, #tpu.memory_space<vmem>>) attributes {dimension_semantics = [#tpu.dimension_semantics<parallel>], iteration_bounds = array<i64: 1>, scalar_prefetch = 0 : i64, scratch_operands = 1 : i64, tpu.core_type = #tpu.core_type<tc>, window_params = [{transform_indices = @transform_0, window_bounds = array<i64: 16, 32>}, {pipeline_mode = #tpu.pipeline_mode<synchronous>, transform_indices = @transform_1, window_bounds = array<i64: 32, 128>}, {pipeline_mode = #tpu.pipeline_mode<synchronous>, transform_indices = @transform_2, window_bounds = array<i64: 128, 128>}, {transform_indices = @transform_3, window_bounds = array<i64: 16, 128>}]} {
    %c0 = arith.constant 0 : index
    %c0_0 = arith.constant 0 : index
    %0 = vector.load %arg1[%c0, %c0_0] : memref<16x32xbf16, #tpu.memory_space<vmem>>, vector<16x32xbf16>
    %c0_1 = arith.constant 0 : index
    %c0_2 = arith.constant 0 : index
    %1 = vector.load %arg2[%c0_1, %c0_2] : memref<32x128xbf16, #tpu.memory_space<vmem>>, vector<32x128xbf16>
    %cst = arith.constant dense<0.000000e+00> : vector<16x128xf32>
    %2 = tpu.matmul %0, %1, %cst {dimension_numbers = #tpu.dot_dimension_numbers<[1], [0], [0], [1], [0, 0, 1, 1], [], []>} : vector<16x32xbf16>, vector<32x128xbf16>, vector<16x128xf32> -> vector<16x128xf32>
    %c0_3 = arith.constant 0 : index
    %c0_4 = arith.constant 0 : index
    %3 = vector.load %arg5[%c0_3, %c0_4] : memref<16x128xf32, #tpu.memory_space<vmem>>, vector<16x128xf32>
    tpu.vector_store %arg5[%c0_3, %c0_4], %2 {strides = array<i32>} : memref<16x128xf32, #tpu.memory_space<vmem>>, vector<16x128xf32>,
    %c0_5 = arith.constant 0 : index
    %c0_6 = arith.constant 0 : index
    %4 = vector.load %arg5[%c0_5, %c0_6] : memref<16x128xf32, #tpu.memory_space<vmem>>, vector<16x128xf32>
    %cst_7 = arith.constant -0.0169384684 : f32
    %cst_8 = arith.constant 0.0169384684 : f32
    %5 = vector.broadcast %cst_7 : f32 to vector<16x128xf32>
    %6 = arith.maximumf %5, %4 : vector<16x128xf32>
    %7 = vector.broadcast %cst_8 : f32 to vector<16x128xf32>
    %8 = arith.minimumf %7, %6 : vector<16x128xf32>
    %9 = arith.subf %4, %8 : vector<16x128xf32>
    %c0_9 = arith.constant 0 : index
    %c0_10 = arith.constant 0 : index
    %10 = vector.load %arg3[%c0_9, %c0_10] : memref<128x128xbf16, #tpu.memory_space<vmem>>, vector<128x128xbf16>
    %c0_i32 = arith.constant 0 : i32
    %c0_11 = arith.constant 0 : index
    %c0_12 = arith.constant 0 : index
    %11 = vector.load %arg5[%c0_11, %c0_12] : memref<16x128xf32, #tpu.memory_space<vmem>>, vector<16x128xf32>
    %12 = arith.truncf %9 : vector<16x128xf32> to vector<16x128xbf16>
    %cst_13 = arith.constant dense<0.000000e+00> : vector<16x128xf32>
    %13 = tpu.matmul %12, %10, %cst_13 {dimension_numbers = #tpu.dot_dimension_numbers<[1], [0], [0], [1], [0, 0, 1, 1], [], []>} : vector<16x128xbf16>, vector<128x128xbf16>, vector<16x128xf32> -> vector<16x128xf32>
    %14 = arith.addf %11, %13 : vector<16x128xf32>
    %cst_14 = arith.constant -0.0169384684 : f32
    %cst_15 = arith.constant 0.0169384684 : f32
    %15 = vector.broadcast %cst_14 : f32 to vector<16x128xf32>
    %16 = arith.maximumf %15, %14 : vector<16x128xf32>
    %17 = vector.broadcast %cst_15 : f32 to vector<16x128xf32>
    %18 = arith.minimumf %17, %16 : vector<16x128xf32>
    %19 = arith.subf %14, %18 : vector<16x128xf32>
    %c1_i32 = arith.constant 1 : i32
    %c0_16 = arith.constant 0 : index
    %c0_17 = arith.constant 0 : index
    %20 = vector.load %arg5[%c0_16, %c0_17] : memref<16x128xf32, #tpu.memory_space<vmem>>, vector<16x128xf32>
    %21 = arith.truncf %19 : vector<16x128xf32> to vector<16x128xbf16>
    %cst_18 = arith.constant dense<0.000000e+00> : vector<16x128xf32>
    %22 = tpu.matmul %21, %10, %cst_18 {dimension_numbers = #tpu.dot_dimension_numbers<[1], [0], [0], [1], [0, 0, 1, 1], [], []>} : vector<16x128xbf16>, vector<128x128xbf16>, vector<16x128xf32> -> vector<16x128xf32>
    %23 = arith.addf %20, %22 : vector<16x128xf32>
    %cst_19 = arith.constant -0.0169384684 : f32
    %cst_20 = arith.constant 0.0169384684 : f32
    %24 = vector.broadcast %cst_19 : f32 to vector<16x128xf32>
    %25 = arith.maximumf %24, %23 : vector<16x128xf32>
    %26 = vector.broadcast %cst_20 : f32 to vector<16x128xf32>
    %27 = arith.minimumf %26, %25 : vector<16x128xf32>
    %28 = arith.subf %23, %27 : vector<16x128xf32>
    %c2_i32 = arith.constant 2 : i32
    %c0_21 = arith.constant 0 : index
    %c0_22 = arith.constant 0 : index
    %29 = vector.load %arg5[%c0_21, %c0_22] : memref<16x128xf32, #tpu.memory_space<vmem>>, vector<16x128xf32>
    %30 = arith.truncf %28 : vector<16x128xf32> to vector<16x128xbf16>
    %cst_23 = arith.constant dense<0.000000e+00> : vector<16x128xf32>
    %31 = tpu.matmul %30, %10, %cst_23 {dimension_numbers = #tpu.dot_dimension_numbers<[1], [0], [0], [1], [0, 0, 1, 1], [], []>} : vector<16x128xbf16>, vector<128x128xbf16>, vector<16x128xf32> -> vector<16x128xf32>
    %32 = arith.addf %29, %31 : vector<16x128xf32>
    %cst_24 = arith.constant -0.0169384684 : f32
    %cst_25 = arith.constant 0.0169384684 : f32
    %33 = vector.broadcast %cst_24 : f32 to vector<16x128xf32>
    %34 = arith.maximumf %33, %32 : vector<16x128xf32>
    %35 = vector.broadcast %cst_25 : f32 to vector<16x128xf32>
    %36 = arith.minimumf %35, %34 : vector<16x128xf32>
    %37 = arith.subf %32, %36 : vector<16x128xf32>
    %c0_26 = arith.constant 0 : index
    %c0_27 = arith.constant 0 : index
    %38 = vector.load %arg4[%c0_26, %c0_27] : memref<16x128xf32, #tpu.memory_space<vmem>>, vector<16x128xf32>
    tpu.vector_store %arg4[%c0_26, %c0_27], %37 {strides = array<i32>} : memref<16x128xf32, #tpu.memory_space<vmem>>, vector<16x128xf32>,
    return
  }
  func.func @transform_0(%arg0: i32) -> (i32, i32) {
    %c0_i32 = arith.constant 0 : i32
    %c0_i32_0 = arith.constant 0 : i32
    return %arg0, %c0_i32 : i32, i32
  }
  func.func @transform_1(%arg0: i32) -> (i32, i32) {
    %c0_i32 = arith.constant 0 : i32
    %c0_i32_0 = arith.constant 0 : i32
    %c0_i32_1 = arith.constant 0 : i32
    return %c0_i32, %c0_i32_0 : i32, i32
  }
  func.func @transform_2(%arg0: i32) -> (i32, i32) {
    %c0_i32 = arith.constant 0 : i32
    %c0_i32_0 = arith.constant 0 : i32
    %c0_i32_1 = arith.constant 0 : i32
    return %c0_i32, %c0_i32_0 : i32, i32
  }
  func.func @transform_3(%arg0: i32) -> (i32, i32) {
    %c0_i32 = arith.constant 0 : i32
    %c0_i32_0 = arith.constant 0 : i32
    return %arg0, %c0_i32 : i32, i32
  }
}

module attributes {stable_mosaic.version = 11 : i64} {
  func.func @_lista_kernel(%arg0: i32, %arg1: memref<16x32xbf16, #tpu.memory_space<vmem>>, %arg2: memref<32x128xbf16, #tpu.memory_space<vmem>>, %arg3: memref<128x128xbf16, #tpu.memory_space<vmem>>, %arg4: memref<16x128xf32, #tpu.memory_space<vmem>>, %arg5: memref<16x128xf32, #tpu.memory_space<vmem>>) attributes {dimension_semantics = [#tpu.dimension_semantics<parallel>], iteration_bounds = array<i64: 1>, scalar_prefetch = 0 : i64, scratch_operands = 1 : i64, tpu.core_type = #tpu.core_type<tc>, window_params = [{transform_indices = @transform_0, window_bounds = array<i64: 16, 32>}, {pipeline_mode = #tpu.pipeline_mode<synchronous>, transform_indices = @transform_1, window_bounds = array<i64: 32, 128>}, {pipeline_mode = #tpu.pipeline_mode<synchronous>, transform_indices = @transform_2, window_bounds = array<i64: 128, 128>}, {transform_indices = @transform_3, window_bounds = array<i64: 16, 128>}]} {
    %c0 = arith.constant 0 : index
    %c0_0 = arith.constant 0 : index
    %0 = vector.load %arg1[%c0, %c0_0] : memref<16x32xbf16, #tpu.memory_space<vmem>>, vector<16x32xbf16>
    %c0_1 = arith.constant 0 : index
    %c0_2 = arith.constant 0 : index
    %1 = vector.load %arg2[%c0_1, %c0_2] : memref<32x128xbf16, #tpu.memory_space<vmem>>, vector<32x128xbf16>
    %cst = arith.constant dense<0.000000e+00> : vector<16x128xf32>
    %2 = tpu.matmul %0, %1, %cst {dimension_numbers = #tpu.dot_dimension_numbers<[1], [0], [0], [1], [0, 0, 1, 1], [], []>} : vector<16x32xbf16>, vector<32x128xbf16>, vector<16x128xf32> -> vector<16x128xf32>
    %c0_3 = arith.constant 0 : index
    %c0_4 = arith.constant 0 : index
    %3 = vector.load %arg5[%c0_3, %c0_4] : memref<16x128xf32, #tpu.memory_space<vmem>>, vector<16x128xf32>
    tpu.vector_store %arg5[%c0_3, %c0_4], %2 {strides = array<i32>} : memref<16x128xf32, #tpu.memory_space<vmem>>, vector<16x128xf32>,
    %c0_5 = arith.constant 0 : index
    %c0_6 = arith.constant 0 : index
    %4 = vector.load %arg5[%c0_5, %c0_6] : memref<16x128xf32, #tpu.memory_space<vmem>>, vector<16x128xf32>
    %cst_7 = arith.constant -0.0169384684 : f32
    %cst_8 = arith.constant 0.0169384684 : f32
    %5 = vector.broadcast %cst_7 : f32 to vector<16x128xf32>
    %6 = arith.maximumf %5, %4 : vector<16x128xf32>
    %7 = vector.broadcast %cst_8 : f32 to vector<16x128xf32>
    %8 = arith.minimumf %7, %6 : vector<16x128xf32>
    %9 = arith.subf %4, %8 : vector<16x128xf32>
    %c0_9 = arith.constant 0 : index
    %c0_10 = arith.constant 0 : index
    %10 = vector.load %arg3[%c0_9, %c0_10] : memref<128x128xbf16, #tpu.memory_space<vmem>>, vector<128x128xbf16>
    %c0_i32 = arith.constant 0 : i32
    %c0_11 = arith.constant 0 : index
    %c0_12 = arith.constant 0 : index
    %11 = vector.load %arg5[%c0_11, %c0_12] : memref<16x128xf32, #tpu.memory_space<vmem>>, vector<16x128xf32>
    %12 = arith.truncf %9 : vector<16x128xf32> to vector<16x128xbf16>
    %cst_13 = arith.constant dense<0.000000e+00> : vector<16x128xf32>
    %13 = tpu.matmul %12, %10, %cst_13 {dimension_numbers = #tpu.dot_dimension_numbers<[1], [0], [0], [1], [0, 0, 1, 1], [], []>} : vector<16x128xbf16>, vector<128x128xbf16>, vector<16x128xf32> -> vector<16x128xf32>
    %14 = arith.addf %11, %13 : vector<16x128xf32>
    %cst_14 = arith.constant -0.0169384684 : f32
    %cst_15 = arith.constant 0.0169384684 : f32
    %15 = vector.broadcast %cst_14 : f32 to vector<16x128xf32>
    %16 = arith.maximumf %15, %14 : vector<16x128xf32>
    %17 = vector.broadcast %cst_15 : f32 to vector<16x128xf32>
    %18 = arith.minimumf %17, %16 : vector<16x128xf32>
    %19 = arith.subf %14, %18 : vector<16x128xf32>
    %c1_i32 = arith.constant 1 : i32
    %c0_16 = arith.constant 0 : index
    %c0_17 = arith.constant 0 : index
    %20 = vector.load %arg5[%c0_16, %c0_17] : memref<16x128xf32, #tpu.memory_space<vmem>>, vector<16x128xf32>
    %21 = arith.truncf %19 : vector<16x128xf32> to vector<16x128xbf16>
    %cst_18 = arith.constant dense<0.000000e+00> : vector<16x128xf32>
    %22 = tpu.matmul %21, %10, %cst_18 {dimension_numbers = #tpu.dot_dimension_numbers<[1], [0], [0], [1], [0, 0, 1, 1], [], []>} : vector<16x128xbf16>, vector<128x128xbf16>, vector<16x128xf32> -> vector<16x128xf32>
    %23 = arith.addf %20, %22 : vector<16x128xf32>
    %cst_19 = arith.constant -0.0169384684 : f32
    %cst_20 = arith.constant 0.0169384684 : f32
    %24 = vector.broadcast %cst_19 : f32 to vector<16x128xf32>
    %25 = arith.maximumf %24, %23 : vector<16x128xf32>
    %26 = vector.broadcast %cst_20 : f32 to vector<16x128xf32>
    %27 = arith.minimumf %26, %25 : vector<16x128xf32>
    %28 = arith.subf %23, %27 : vector<16x128xf32>
    %c2_i32 = arith.constant 2 : i32
    %c0_21 = arith.constant 0 : index
    %c0_22 = arith.constant 0 : index
    %29 = vector.load %arg5[%c0_21, %c0_22] : memref<16x128xf32, #tpu.memory_space<vmem>>, vector<16x128xf32>
    %30 = arith.truncf %28 : vector<16x128xf32> to vector<16x128xbf16>
    %cst_23 = arith.constant dense<0.000000e+00> : vector<16x128xf32>
    %31 = tpu.matmul %30, %10, %cst_23 {dimension_numbers = #tpu.dot_dimension_numbers<[1], [0], [0], [1], [0, 0, 1, 1], [], []>} : vector<16x128xbf16>, vector<128x128xbf16>, vector<16x128xf32> -> vector<16x128xf32>
    %32 = arith.addf %29, %31 : vector<16x128xf32>
    %cst_24 = arith.constant -0.0169384684 : f32
    %cst_25 = arith.constant 0.0169384684 : f32
    %33 = vector.broadcast %cst_24 : f32 to vector<16x128xf32>
    %34 = arith.maximumf %33, %32 : vector<16x128xf32>
    %35 = vector.broadcast %cst_25 : f32 to vector<16x128xf32>
    %36 = arith.minimumf %35, %34 : vector<16x128xf32>
    %37 = arith.subf %32, %36 : vector<16x128xf32>
    %c0_26 = arith.constant 0 : index
    %c0_27 = arith.constant 0 : index
    %38 = vector.load %arg4[%c0_26, %c0_27] : memref<16x128xf32, #tpu.memory_space<vmem>>, vector<16x128xf32>
    tpu.vector_store %arg4[%c0_26, %c0_27], %37 {strides = array<i32>} : memref<16x128xf32, #tpu.memory_space<vmem>>, vector<16x128xf32>,
    return
  }
  func.func @transform_0(%arg0: i32) -> (i32, i32) {
    %c0_i32 = arith.constant 0 : i32
    %c0_i32_0 = arith.constant 0 : i32
    return %arg0, %c0_i32 : i32, i32
  }
  func.func @transform_1(%arg0: i32) -> (i32, i32) {
    %c0_i32 = arith.constant 0 : i32
    %c0_i32_0 = arith.constant 0 : i32
    %c0_i32_1 = arith.constant 0 : i32
    return %c0_i32, %c0_i32_0 : i32, i32
  }
  func.func @transform_2(%arg0: i32) -> (i32, i32) {
    %c0_i32 = arith.constant 0 : i32
    %c0_i32_0 = arith.constant 0 : i32
    %c0_i32_1 = arith.constant 0 : i32
    return %c0_i32, %c0_i32_0 : i32, i32
  }
  func.func @transform_3(%arg0: i32) -> (i32, i32) {
    %c0_i32 = arith.constant 0 : i32
    %c0_i32_0 = arith.constant 0 : i32
    return %arg0, %c0_i32 : i32, i32
  }
}

</mosaic_0001>

<llo_original>
// kernel: tpu_custom_call.1
$region0: #{tpu_custom_call.1}
  #allocation0 [shape = 'u32[]', space=smem, size = 0x4, offset = 0x4, fixed_abs, tag = 'smem constant byte address 0x4 - core index']
  #allocation1 [shape = 'u32[144,128]{1,0:T(1,128)}', space=vmem, size = 0x12000, scoped, tag = 'internal scratch']
  #allocation2 [shape = 'f32[16,128]{1,0:T(8,128)}', space=vmem, size = 0x2000, scoped, tag = 'scratch operand']
  %s0 = inlined_call_operand.hbm [shape: bf16[16,32], index: 0, kind: input, shape index: {}]
  %s1 = inlined_call_operand.hbm [shape: bf16[32,128], index: 1, kind: input, shape index: {}]
  %s2 = inlined_call_operand.hbm [shape: bf16[128,128], index: 2, kind: input, shape index: {}]
  %s3 = inlined_call_operand.hbm [shape: f32[16,128], index: 3, kind: output, shape index: {}]
  %s4 = sld [smem:[#allocation0]]
  $region34: #{tpu_custom_call.1} parent=0
    _
  %s6 = ssub.s32 1, %s4
  %s7 = scalar_select 0, %s6, %s4
  $region1: #{tpu_custom_call.1} parent=0
    #allocation3 [shape = 'u8[4096]{0}', space=vmem, size = 0x1000, scoped, tag = 'input window, operand 0, single buffered']
    #allocation4 [shape = 's32[1]{0}', space=sflag, size = 0x4, scoped, tag = 'scoped memory for tpu_custom_call.1']
    #allocation5 [shape = 's32[1]{0}', space=sflag, size = 0x4, scoped, tag = 'scoped memory for tpu_custom_call.1']
    #allocation6 [shape = 'u8[8192]{0}', space=vmem, size = 0x2000, scoped, tag = 'input window, operand 1, single buffered']
    #allocation7 [shape = 's32[1]{0}', space=sflag, size = 0x4, scoped, tag = 'scoped memory for tpu_custom_call.1']
    #allocation8 [shape = 'u8[32768]{0}', space=vmem, size = 0x8000, scoped, tag = 'input window, operand 2, single buffered']
    #allocation9 [shape = 'u8[8192]{0}', space=vmem, size = 0x2000, scoped, tag = 'output window, operand 0, single buffered']
    %8 = vsyncpa [#allocation4], 0
    %9 = vsyncpa [#allocation7], 0
    %10 = vsyncpa [#allocation5], 0
    // Predicated region
    $region2: #{tpu_custom_call.1} parent=1 // pred_check
      _
    $region3: #{tpu_custom_call.1} parent=1 // pred_check_branch
      %12 = sbr.rel (0) target = $region5
    $region4: #{tpu_custom_call.1} parent=1 // pred_region
      %s14 = ssub.s32 128, 128
      %15 = vsyncadd [#allocation4], %s14
      %s16 = sshll.u32 [#allocation3], 4
      %s17 = int_to_ptr.vmem [resolvable:$true] %s16
      %22 = dma.hbm_to_vmem [thread:$0]  %s0, 128, %s17, [#allocation4], 64, 64, 4
    $region5: #{tpu_custom_call.1} parent=1 // pred_fallthru
      _
    // Predicated region
    $region6: #{tpu_custom_call.1} parent=1 // pred_check
      _
    $region7: #{tpu_custom_call.1} parent=1 // pred_check_branch
      %24 = sbr.rel (0) target = $region9
    $region8: #{tpu_custom_call.1} parent=1 // pred_region
      %s26 = ssub.s32 256, 256
      %27 = vsyncadd [#allocation7], %s26
      %s28 = sshll.u32 [#allocation6], 4
      %s29 = int_to_ptr.vmem [resolvable:$true] %s28
      %34 = dma.hbm_to_vmem [thread:$0]  %s1, 256, %s29, [#allocation7], 64, 64, 4
    $region9: #{tpu_custom_call.1} parent=1 // pred_fallthru
      _
    // Predicated region
    $region10: #{tpu_custom_call.1} parent=1 // pred_check
      _
    $region11: #{tpu_custom_call.1} parent=1 // pred_check_branch
      %36 = sbr.rel (0) target = $region13
    $region12: #{tpu_custom_call.1} parent=1 // pred_region
      %s38 = ssub.s32 1024, 1024
      %39 = vsyncadd [#allocation7], %s38
      %s40 = sshll.u32 [#allocation8], 4
      %s41 = int_to_ptr.vmem [resolvable:$true] %s40
      %46 = dma.hbm_to_vmem [thread:$0]  %s2, 1024, %s41, [#allocation7], 64, 64, 4
    $region13: #{tpu_custom_call.1} parent=1 // pred_fallthru
      _
    // Predicated region
    $region14: #{tpu_custom_call.1} parent=1 // pred_check
      _
    $region15: #{tpu_custom_call.1} parent=1 // pred_check_branch
      %48 = sbr.rel (0) target = $region17
    $region16: #{tpu_custom_call.1} parent=1 // pred_region
      %49 = dma.done [#allocation4], 128
    $region17: #{tpu_custom_call.1} parent=1 // pred_fallthru
      _
    // Predicated region
    $region18: #{tpu_custom_call.1} parent=1 // pred_check
      _
    $region19: #{tpu_custom_call.1} parent=1 // pred_check_branch
      %51 = sbr.rel (0) target = $region21
    $region20: #{tpu_custom_call.1} parent=1 // pred_region
      %52 = dma.done [#allocation7], 256
    $region21: #{tpu_custom_call.1} parent=1 // pred_fallthru
      _
    // Predicated region
    $region22: #{tpu_custom_call.1} parent=1 // pred_check
      _
    $region23: #{tpu_custom_call.1} parent=1 // pred_check_branch
      %54 = sbr.rel (0) target = $region25
    $region24: #{tpu_custom_call.1} parent=1 // pred_region
      %55 = dma.done [#allocation7], 1024
    $region25: #{tpu_custom_call.1} parent=1 // pred_fallthru
      _
    %v57 = vld [vmem:[#allocation3] sm:$0xf]
    %v58 = vld [vmem:[#allocation3 + $0x4] sm:$0xf]
    %v59 = vld [vmem:[#allocation6] sm:$0xf]
    %v60 = vld [vmem:[#allocation6 + $0x4] sm:$0xf]
    %v61 = vld [vmem:[#allocation6 + $0x8] sm:$0xf]
    %v62 = vld [vmem:[#allocation6 + $0xc] sm:$0xf]
    %v65 = vunpack.c.l.b16 %v57
    %v66 = vunpack.c.l.b16 %v58
    %v67 = vpack.c.b16 %v66, %v65
    %v72 = vunpack.c.l.b16 %v59
    %v73 = vunpack.c.l.b16 %v60
    %v74 = vunpack.c.l.b16 %v61
    %v75 = vunpack.c.l.b16 %v62
    %v76 = vpack.c.b16 %v73, %v72
    %v77 = vpack.c.b16 %v75, %v74
    %vm80 = vcmask 261120
    %v82 = vsel %vm80, %v67, 0
    %84 = vmatprep.subr.bf16.mxu0 0
    %85 = vmatpush1.bf16.msra.mxu0 0
    %86 = vmatprep.subr.bf16.mxu0 0
    %87 = vmatpush1.bf16.msra.mxu0 0
    %88 = vmatprep.subr.bf16.mxu0 0
    %89 = vmatpush1.bf16.msra.mxu0 0
    %90 = vmatprep.subr.bf16.mxu0 0
    %91 = vmatpush1.bf16.msra.mxu0 0
    %92 = vmatprep.subr.bf16.mxu0 0
    %93 = vmatpush1.bf16.msra.mxu0 0
    %94 = vmatprep.subr.bf16.mxu0 0
    %95 = vmatpush1.bf16.msra.mxu0 0
    %96 = vmatprep.subr.bf16.mxu0 0
    %97 = vmatpush1.bf16.msra.mxu0 %v77
    %98 = vmatprep.subr.bf16.mxu0 0
    %99 = vmatpush1.bf16.msra.mxu0 %v76
    %100 = vmatprep.subr.bf16.mxu0 0
    %101 = vmatpush2.bf16.msra.mxu0 0
    %102 = vmatprep.subr.bf16.mxu0 0
    %103 = vmatpush2.bf16.msra.mxu0 0
    %104 = vmatprep.subr.bf16.mxu0 0
    %105 = vmatpush2.bf16.msra.mxu0 0
    %106 = vmatprep.subr.bf16.mxu0 0
    %107 = vmatpush2.bf16.msra.mxu0 0
    %108 = vmatprep.subr.bf16.mxu0 0
    %109 = vmatpush2.bf16.msra.mxu0 0
    %110 = vmatprep.subr.bf16.mxu0 0
    %111 = vmatpush2.bf16.msra.mxu0 0
    %112 = vmatprep.subr.bf16.mxu0 0
    %113 = vmatpush2.bf16.msra.mxu0 0
    %114 = vmatprep.subr.bf16.mxu0 0
    %115 = vmatpush2.bf16.msra.mxu0 0
    %116 = vmatprep.mubr.bf16.mxu0 0
    %117 = vmatmul.mubr.bf16.gmra.mxu0 %v82
    %v118 = vpop.f32.mrf.mxu0
    %v119 = vadd.f32 0.0, %v118
    %v120 = vpop.f32.mrf.mxu0
    %v121 = vpop.f32.mrf.mxu0
    %v122 = vadd.f32 0.0, %v121
    %v123 = vpop.f32.mrf.mxu0
    %124 = vdwg.mxu0
    %125 = vst [vmem:[#allocation2] sm:$0xff] %v119
    %126 = vst [vmem:[#allocation2 + $0x8] sm:$0xff] %v122
    %v127 = vld [vmem:[#allocation2] sm:$0xff]
    %v128 = vld [vmem:[#allocation2 + $0x8] sm:$0xff]
    %v129 = vmax.f32 %v127, -0.016938468
    %v130 = vmax.f32 %v128, -0.016938468
    %v131 = vmin.f32 %v129, 0.016938468
    %v132 = vmin.f32 %v130, 0.016938468
    %v133 = vsub.f32 %v127, %v131
    %v134 = vsub.f32 %v128, %v132
    %v135 = vld [vmem:[#allocation8] sm:$0xf]
    %v136 = vld [vmem:[#allocation8 + $0x4] sm:$0xf]
    %v137 = vld [vmem:[#allocation8 + $0x8] sm:$0xf]
    %v138 = vld [vmem:[#allocation8 + $0xc] sm:$0xf]
    %v139 = vld [vmem:[#allocation8 + $0x10] sm:$0xf]
    %v140 = vld [vmem:[#allocation8 + $0x14] sm:$0xf]
    %v141 = vld [vmem:[#allocation8 + $0x18] sm:$0xf]
    %v142 = vld [vmem:[#allocation8 + $0x1c] sm:$0xf]
    %v143 = vld [vmem:[#allocation8 + $0x20] sm:$0xf]
    %v144 = vld [vmem:[#allocation8 + $0x24] sm:$0xf]
    %v145 = vld [vmem:[#allocation8 + $0x28] sm:$0xf]
    %v146 = vld [vmem:[#allocation8 + $0x2c] sm:$0xf]
    %v147 = vld [vmem:[#allocation8 + $0x30] sm:$0xf]
    %v148 = vld [vmem:[#allocation8 + $0x34] sm:$0xf]
    %v149 = vld [vmem:[#allocation8 + $0x38] sm:$0xf]
    %v150 = vld [vmem:[#allocation8 + $0x3c] sm:$0xf]
    %v151 = vpack.c.bf16 %v134, %v133
    %v168 = vunpack.c.l.b16 %v135
    %v169 = vunpack.c.l.b16 %v136
    %v170 = vunpack.c.l.b16 %v137
    %v171 = vunpack.c.l.b16 %v138
    %v172 = vunpack.c.l.b16 %v139
    %v173 = vunpack.c.l.b16 %v140
    %v174 = vunpack.c.l.b16 %v141
    %v175 = vunpack.c.l.b16 %v142
    %v176 = vunpack.c.l.b16 %v143
    %v177 = vunpack.c.l.b16 %v144
    %v178 = vunpack.c.l.b16 %v145
    %v179 = vunpack.c.l.b16 %v146
    %v180 = vunpack.c.l.b16 %v147
    %v181 = vunpack.c.l.b16 %v148
    %v182 = vunpack.c.l.b16 %v149
    %v183 = vunpack.c.l.b16 %v150
    %v184 = vpack.c.b16 %v169, %v168
    %v185 = vpack.c.b16 %v171, %v170
    %v186 = vpack.c.b16 %v173, %v172
    %v187 = vpack.c.b16 %v175, %v174
    %v188 = vpack.c.b16 %v177, %v176
    %v189 = vpack.c.b16 %v179, %v178
    %v190 = vpack.c.b16 %v181, %v180
    %v191 = vpack.c.b16 %v183, %v182
    %200 = vmatprep.subr.bf16.mxu0 0
    %201 = vmatpush1.bf16.msra.mxu0 %v191
    %202 = vmatprep.subr.bf16.mxu0 0
    %203 = vmatpush1.bf16.msra.mxu0 %v190
    %204 = vmatprep.subr.bf16.mxu0 0
    %205 = vmatpush1.bf16.msra.mxu0 %v189
    %206 = vmatprep.subr.bf16.mxu0 0
    %207 = vmatpush1.bf16.msra.mxu0 %v188
    %208 = vmatprep.subr.bf16.mxu0 0
    %209 = vmatpush1.bf16.msra.mxu0 %v187
    %210 = vmatprep.subr.bf16.mxu0 0
    %211 = vmatpush1.bf16.msra.mxu0 %v186
    %212 = vmatprep.subr.bf16.mxu0 0
    %213 = vmatpush1.bf16.msra.mxu0 %v185
    %214 = vmatprep.subr.bf16.mxu0 0
    %215 = vmatpush1.bf16.msra.mxu0 %v184
    %216 = vmatprep.subr.bf16.mxu0 0
    %217 = vmatpush2.bf16.msra.mxu0 0
    %218 = vmatprep.subr.bf16.mxu0 0
    %219 = vmatpush2.bf16.msra.mxu0 0
    %220 = vmatprep.subr.bf16.mxu0 0
    %221 = vmatpush2.bf16.msra.mxu0 0
    %222 = vmatprep.subr.bf16.mxu0 0
    %223 = vmatpush2.bf16.msra.mxu0 0
    %224 = vmatprep.subr.bf16.mxu0 0
    %225 = vmatpush2.bf16.msra.mxu0 0
    %226 = vmatprep.subr.bf16.mxu0 0
    %227 = vmatpush2.bf16.msra.mxu0 0
    %228 = vmatprep.subr.bf16.mxu0 0
    %229 = vmatpush2.bf16.msra.mxu0 0
    %230 = vmatprep.subr.bf16.mxu0 0
    %231 = vmatpush2.bf16.msra.mxu0 0
    %232 = vmatprep.mubr.bf16.mxu0 0
    %233 = vmatmul.mubr.bf16.gmra.mxu0 %v151
    %v234 = vpop.f32.mrf.mxu0
    %v235 = vadd.f32 0.0, %v234
    %v236 = vpop.f32.mrf.mxu0
    %v237 = vpop.f32.mrf.mxu0
    %v238 = vadd.f32 0.0, %v237
    %v239 = vpop.f32.mrf.mxu0
    %240 = vdwg.mxu0
    %v241 = vadd.f32 %v127, %v235
    %v242 = vadd.f32 %v128, %v238
    %v243 = vmax.f32 %v241, -0.016938468
    %v244 = vmax.f32 %v242, -0.016938468
    %v245 = vmin.f32 %v243, 0.016938468
    %v246 = vmin.f32 %v244, 0.016938468
    %v247 = vsub.f32 %v241, %v245
    %v248 = vsub.f32 %v242, %v246
    %v249 = vpack.c.bf16 %v248, %v247
    %250 = vmatprep.subr.bf16.mxu0 0
    %251 = vmatpush1.bf16.msra.mxu0 %v191
    %252 = vmatprep.subr.bf16.mxu0 0
    %253 = vmatpush1.bf16.msra.mxu0 %v190
    %254 = vmatprep.subr.bf16.mxu0 0
    %255 = vmatpush1.bf16.msra.mxu0 %v189
    %256 = vmatprep.subr.bf16.mxu0 0
    %257 = vmatpush1.bf16.msra.mxu0 %v188
    %258 = vmatprep.subr.bf16.mxu0 0
    %259 = vmatpush1.bf16.msra.mxu0 %v187
    %260 = vmatprep.subr.bf16.mxu0 0
    %261 = vmatpush1.bf16.msra.mxu0 %v186
    %262 = vmatprep.subr.bf16.mxu0 0
    %263 = vmatpush1.bf16.msra.mxu0 %v185
    %264 = vmatprep.subr.bf16.mxu0 0
    %265 = vmatpush1.bf16.msra.mxu0 %v184
    %266 = vmatprep.subr.bf16.mxu0 0
    %267 = vmatpush2.bf16.msra.mxu0 0
    %268 = vmatprep.subr.bf16.mxu0 0
    %269 = vmatpush2.bf16.msra.mxu0 0
    %270 = vmatprep.subr.bf16.mxu0 0
    %271 = vmatpush2.bf16.msra.mxu0 0
    %272 = vmatprep.subr.bf16.mxu0 0
    %273 = vmatpush2.bf16.msra.mxu0 0
    %274 = vmatprep.subr.bf16.mxu0 0
    %275 = vmatpush2.bf16.msra.mxu0 0
    %276 = vmatprep.subr.bf16.mxu0 0
    %277 = vmatpush2.bf16.msra.mxu0 0
    %278 = vmatprep.subr.bf16.mxu0 0
    %279 = vmatpush2.bf16.msra.mxu0 0
    %280 = vmatprep.subr.bf16.mxu0 0
    %281 = vmatpush2.bf16.msra.mxu0 0
    %282 = vmatprep.mubr.bf16.mxu0 0
    %283 = vmatmul.mubr.bf16.gmra.mxu0 %v249
    %v284 = vpop.f32.mrf.mxu0
    %v285 = vadd.f32 0.0, %v284
    %v286 = vpop.f32.mrf.mxu0
    %v287 = vpop.f32.mrf.mxu0
    %v288 = vadd.f32 0.0, %v287
    %v289 = vpop.f32.mrf.mxu0
    %290 = vdwg.mxu0
    %v291 = vadd.f32 %v127, %v285
    %v292 = vadd.f32 %v128, %v288
    %v293 = vmax.f32 %v291, -0.016938468
    %v294 = vmax.f32 %v292, -0.016938468
    %v295 = vmin.f32 %v293, 0.016938468
    %v296 = vmin.f32 %v294, 0.016938468
    %v297 = vsub.f32 %v291, %v295
    %v298 = vsub.f32 %v292, %v296
    %v299 = vpack.c.bf16 %v298, %v297
    %300 = vmatprep.subr.bf16.mxu0 0
    %301 = vmatpush1.bf16.msra.mxu0 %v191
    %302 = vmatprep.subr.bf16.mxu0 0
    %303 = vmatpush1.bf16.msra.mxu0 %v190
    %304 = vmatprep.subr.bf16.mxu0 0
    %305 = vmatpush1.bf16.msra.mxu0 %v189
    %306 = vmatprep.subr.bf16.mxu0 0
    %307 = vmatpush1.bf16.msra.mxu0 %v188
    %308 = vmatprep.subr.bf16.mxu0 0
    %309 = vmatpush1.bf16.msra.mxu0 %v187
    %310 = vmatprep.subr.bf16.mxu0 0
    %311 = vmatpush1.bf16.msra.mxu0 %v186
    %312 = vmatprep.subr.bf16.mxu0 0
    %313 = vmatpush1.bf16.msra.mxu0 %v185
    %314 = vmatprep.subr.bf16.mxu0 0
    %315 = vmatpush1.bf16.msra.mxu0 %v184
    %316 = vmatprep.subr.bf16.mxu0 0
    %317 = vmatpush2.bf16.msra.mxu0 0
    %318 = vmatprep.subr.bf16.mxu0 0
    %319 = vmatpush2.bf16.msra.mxu0 0
    %320 = vmatprep.subr.bf16.mxu0 0
    %321 = vmatpush2.bf16.msra.mxu0 0
    %322 = vmatprep.subr.bf16.mxu0 0
    %323 = vmatpush2.bf16.msra.mxu0 0
    %324 = vmatprep.subr.bf16.mxu0 0
    %325 = vmatpush2.bf16.msra.mxu0 0
    %326 = vmatprep.subr.bf16.mxu0 0
    %327 = vmatpush2.bf16.msra.mxu0 0
    %328 = vmatprep.subr.bf16.mxu0 0
    %329 = vmatpush2.bf16.msra.mxu0 0
    %330 = vmatprep.subr.bf16.mxu0 0
    %331 = vmatpush2.bf16.msra.mxu0 0
    %332 = vmatprep.mubr.bf16.mxu0 0
    %333 = vmatmul.mubr.bf16.gmra.mxu0 %v299
    %v334 = vpop.f32.mrf.mxu0
    %v335 = vadd.f32 0.0, %v334
    %v336 = vpop.f32.mrf.mxu0
    %v337 = vpop.f32.mrf.mxu0
    %v338 = vadd.f32 0.0, %v337
    %v339 = vpop.f32.mrf.mxu0
    %340 = vdwg.mxu0
    %v341 = vadd.f32 %v127, %v335
    %v342 = vadd.f32 %v128, %v338
    %v343 = vmax.f32 %v341, -0.016938468
    %v344 = vmax.f32 %v342, -0.016938468
    %v345 = vmin.f32 %v343, 0.016938468
    %v346 = vmin.f32 %v344, 0.016938468
    %v347 = vsub.f32 %v341, %v345
    %v348 = vsub.f32 %v342, %v346
    %349 = vst [vmem:[#allocation9] sm:$0xff] %v347
    %350 = vst [vmem:[#allocation9 + $0x8] sm:$0xff] %v348
    // Predicated region
    $region26: #{tpu_custom_call.1} parent=1 // pred_check
      _
    $region27: #{tpu_custom_call.1} parent=1 // pred_check_branch
      %352 = sbr.rel (0) target = $region29
    $region28: #{tpu_custom_call.1} parent=1 // pred_region
      %s354 = ssub.s32 256, 256
      %355 = vsyncadd [#allocation5], %s354
      %s356 = sshll.u32 [#allocation9], 4
      %s357 = int_to_ptr.vmem [resolvable:$true] %s356
      %362 = dma.vmem_to_hbm [thread:$0]  %s357, 256, %s3, [#allocation5], 128, 128, 8
    $region29: #{tpu_custom_call.1} parent=1 // pred_fallthru
      _
    // Predicated region
    $region30: #{tpu_custom_call.1} parent=1 // pred_check
      _
    $region31: #{tpu_custom_call.1} parent=1 // pred_check_branch
      %364 = sbr.rel (0) target = $region33
    $region32: #{tpu_custom_call.1} parent=1 // pred_region
      %365 = dma.done [#allocation5], 256
    $region33: #{tpu_custom_call.1} parent=1 // pred_fallthru
      _
    %366 = vsyncpa [#allocation4], 1
    %367 = vsyncpa [#allocation7], 1
    %368 = vsyncpa [#allocation5], 1

// kernel: tpu_custom_call.1
$region0: #{tpu_custom_call.1}
  #allocation0 [shape = 'u32[]', space=smem, size = 0x4, offset = 0x4, fixed_abs, tag = 'smem constant byte address 0x4 - core index']
  #allocation1 [shape = 'u32[144,128]{1,0:T(1,128)}', space=vmem, size = 0x12000, scoped, tag = 'internal scratch']
  #allocation2 [shape = 'f32[16,128]{1,0:T(8,128)}', space=vmem, size = 0x2000, scoped, tag = 'scratch operand']
  %s0 = inlined_call_operand.hbm [shape: bf16[16,32], index: 0, kind: input, shape index: {}]
  %s1 = inlined_call_operand.hbm [shape: bf16[32,128], index: 1, kind: input, shape index: {}]
  %s2 = inlined_call_operand.hbm [shape: bf16[128,128], index: 2, kind: input, shape index: {}]
  %s3 = inlined_call_operand.hbm [shape: f32[16,128], index: 3, kind: output, shape index: {}]
  %s4 = sld [smem:[#allocation0]]
  $region34: #{tpu_custom_call.1} parent=0
    _
  %s6 = ssub.s32 1, %s4
  %s7 = scalar_select 0, %s6, %s4
  $region1: #{tpu_custom_call.1} parent=0
    #allocation3 [shape = 'u8[4096]{0}', space=vmem, size = 0x1000, scoped, tag = 'input window, operand 0, single buffered']
    #allocation4 [shape = 's32[1]{0}', space=sflag, size = 0x4, scoped, tag = 'scoped memory for tpu_custom_call.1']
    #allocation5 [shape = 's32[1]{0}', space=sflag, size = 0x4, scoped, tag = 'scoped memory for tpu_custom_call.1']
    #allocation6 [shape = 'u8[8192]{0}', space=vmem, size = 0x2000, scoped, tag = 'input window, operand 1, single buffered']
    #allocation7 [shape = 's32[1]{0}', space=sflag, size = 0x4, scoped, tag = 'scoped memory for tpu_custom_call.1']
    #allocation8 [shape = 'u8[32768]{0}', space=vmem, size = 0x8000, scoped, tag = 'input window, operand 2, single buffered']
    #allocation9 [shape = 'u8[8192]{0}', space=vmem, size = 0x2000, scoped, tag = 'output window, operand 0, single buffered']
    %8 = vsyncpa [#allocation4], 0
    %9 = vsyncpa [#allocation7], 0
    %10 = vsyncpa [#allocation5], 0
    // Predicated region
    $region2: #{tpu_custom_call.1} parent=1 // pred_check
      _
    $region3: #{tpu_custom_call.1} parent=1 // pred_check_branch
      %12 = sbr.rel (0) target = $region5
    $region4: #{tpu_custom_call.1} parent=1 // pred_region
      %s14 = ssub.s32 128, 128
      %15 = vsyncadd [#allocation4], %s14
      %s16 = sshll.u32 [#allocation3], 4
      %s17 = int_to_ptr.vmem [resolvable:$true] %s16
      %22 = dma.hbm_to_vmem [thread:$0]  %s0, 128, %s17, [#allocation4], 64, 64, 4
    $region5: #{tpu_custom_call.1} parent=1 // pred_fallthru
      _
    // Predicated region
    $region6: #{tpu_custom_call.1} parent=1 // pred_check
      _
    $region7: #{tpu_custom_call.1} parent=1 // pred_check_branch
      %24 = sbr.rel (0) target = $region9
    $region8: #{tpu_custom_call.1} parent=1 // pred_region
      %s26 = ssub.s32 256, 256
      %27 = vsyncadd [#allocation7], %s26
      %s28 = sshll.u32 [#allocation6], 4
      %s29 = int_to_ptr.vmem [resolvable:$true] %s28
      %34 = dma.hbm_to_vmem [thread:$0]  %s1, 256, %s29, [#allocation7], 64, 64, 4
    $region9: #{tpu_custom_call.1} parent=1 // pred_fallthru
      _
    // Predicated region
    $region10: #{tpu_custom_call.1} parent=1 // pred_check
      _
    $region11: #{tpu_custom_call.1} parent=1 // pred_check_branch
      %36 = sbr.rel (0) target = $region13
    $region12: #{tpu_custom_call.1} parent=1 // pred_region
      %s38 = ssub.s32 1024, 1024
      %39 = vsyncadd [#allocation7], %s38
      %s40 = sshll.u32 [#allocation8], 4
      %s41 = int_to_ptr.vmem [resolvable:$true] %s40
      %46 = dma.hbm_to_vmem [thread:$0]  %s2, 1024, %s41, [#allocation7], 64, 64, 4
    $region13: #{tpu_custom_call.1} parent=1 // pred_fallthru
      _
    // Predicated region
    $region14: #{tpu_custom_call.1} parent=1 // pred_check
      _
    $region15: #{tpu_custom_call.1} parent=1 // pred_check_branch
      %48 = sbr.rel (0) target = $region17
    $region16: #{tpu_custom_call.1} parent=1 // pred_region
      %49 = dma.done [#allocation4], 128
    $region17: #{tpu_custom_call.1} parent=1 // pred_fallthru
      _
    // Predicated region
    $region18: #{tpu_custom_call.1} parent=1 // pred_check
      _
    $region19: #{tpu_custom_call.1} parent=1 // pred_check_branch
      %51 = sbr.rel (0) target = $region21
    $region20: #{tpu_custom_call.1} parent=1 // pred_region
      %52 = dma.done [#allocation7], 256
    $region21: #{tpu_custom_call.1} parent=1 // pred_fallthru
      _
    // Predicated region
    $region22: #{tpu_custom_call.1} parent=1 // pred_check
      _
    $region23: #{tpu_custom_call.1} parent=1 // pred_check_branch
      %54 = sbr.rel (0) target = $region25
    $region24: #{tpu_custom_call.1} parent=1 // pred_region
      %55 = dma.done [#allocation7], 1024
    $region25: #{tpu_custom_call.1} parent=1 // pred_fallthru
      _
    %v57 = vld [vmem:[#allocation3] sm:$0xf]
    %v58 = vld [vmem:[#allocation3 + $0x4] sm:$0xf]
    %v59 = vld [vmem:[#allocation6] sm:$0xf]
    %v60 = vld [vmem:[#allocation6 + $0x4] sm:$0xf]
    %v61 = vld [vmem:[#allocation6 + $0x8] sm:$0xf]
    %v62 = vld [vmem:[#allocation6 + $0xc] sm:$0xf]
    %v65 = vunpack.c.l.b16 %v57
    %v66 = vunpack.c.l.b16 %v58
    %v67 = vpack.c.b16 %v66, %v65
    %v72 = vunpack.c.l.b16 %v59
    %v73 = vunpack.c.l.b16 %v60
    %v74 = vunpack.c.l.b16 %v61
    %v75 = vunpack.c.l.b16 %v62
    %v76 = vpack.c.b16 %v73, %v72
    %v77 = vpack.c.b16 %v75, %v74
    %vm80 = vcmask 261120
    %v82 = vsel %vm80, %v67, 0
    %84 = vmatprep.subr.bf16.mxu0 0
    %85 = vmatpush1.bf16.msra.mxu0 0
    %86 = vmatprep.subr.bf16.mxu0 0
    %87 = vmatpush1.bf16.msra.mxu0 0
    %88 = vmatprep.subr.bf16.mxu0 0
    %89 = vmatpush1.bf16.msra.mxu0 0
    %90 = vmatprep.subr.bf16.mxu0 0
    %91 = vmatpush1.bf16.msra.mxu0 0
    %92 = vmatprep.subr.bf16.mxu0 0
    %93 = vmatpush1.bf16.msra.mxu0 0
    %94 = vmatprep.subr.bf16.mxu0 0
    %95 = vmatpush1.bf16.msra.mxu0 0
    %96 = vmatprep.subr.bf16.mxu0 0
    %97 = vmatpush1.bf16.msra.mxu0 %v77
    %98 = vmatprep.subr.bf16.mxu0 0
    %99 = vmatpush1.bf16.msra.mxu0 %v76
    %100 = vmatprep.subr.bf16.mxu0 0
    %101 = vmatpush2.bf16.msra.mxu0 0
    %102 = vmatprep.subr.bf16.mxu0 0
    %103 = vmatpush2.bf16.msra.mxu0 0
    %104 = vmatprep.subr.bf16.mxu0 0
    %105 = vmatpush2.bf16.msra.mxu0 0
    %106 = vmatprep.subr.bf16.mxu0 0
    %107 = vmatpush2.bf16.msra.mxu0 0
    %108 = vmatprep.subr.bf16.mxu0 0
    %109 = vmatpush2.bf16.msra.mxu0 0
    %110 = vmatprep.subr.bf16.mxu0 0
    %111 = vmatpush2.bf16.msra.mxu0 0
    %112 = vmatprep.subr.bf16.mxu0 0
    %113 = vmatpush2.bf16.msra.mxu0 0
    %114 = vmatprep.subr.bf16.mxu0 0
    %115 = vmatpush2.bf16.msra.mxu0 0
    %116 = vmatprep.mubr.bf16.mxu0 0
    %117 = vmatmul.mubr.bf16.gmra.mxu0 %v82
    %v118 = vpop.f32.mrf.mxu0
    %v119 = vadd.f32 0.0, %v118
    %v120 = vpop.f32.mrf.mxu0
    %v121 = vpop.f32.mrf.mxu0
    %v122 = vadd.f32 0.0, %v121
    %v123 = vpop.f32.mrf.mxu0
    %124 = vdwg.mxu0
    %125 = vst [vmem:[#allocation2] sm:$0xff] %v119
    %126 = vst [vmem:[#allocation2 + $0x8] sm:$0xff] %v122
    %v127 = vld [vmem:[#allocation2] sm:$0xff]
    %v128 = vld [vmem:[#allocation2 + $0x8] sm:$0xff]
    %v129 = vmax.f32 %v127, -0.016938468
    %v130 = vmax.f32 %v128, -0.016938468
    %v131 = vmin.f32 %v129, 0.016938468
    %v132 = vmin.f32 %v130, 0.016938468
    %v133 = vsub.f32 %v127, %v131
    %v134 = vsub.f32 %v128, %v132
    %v135 = vld [vmem:[#allocation8] sm:$0xf]
    %v136 = vld [vmem:[#allocation8 + $0x4] sm:$0xf]
    %v137 = vld [vmem:[#allocation8 + $0x8] sm:$0xf]
    %v138 = vld [vmem:[#allocation8 + $0xc] sm:$0xf]
    %v139 = vld [vmem:[#allocation8 + $0x10] sm:$0xf]
    %v140 = vld [vmem:[#allocation8 + $0x14] sm:$0xf]
    %v141 = vld [vmem:[#allocation8 + $0x18] sm:$0xf]
    %v142 = vld [vmem:[#allocation8 + $0x1c] sm:$0xf]
    %v143 = vld [vmem:[#allocation8 + $0x20] sm:$0xf]
    %v144 = vld [vmem:[#allocation8 + $0x24] sm:$0xf]
    %v145 = vld [vmem:[#allocation8 + $0x28] sm:$0xf]
    %v146 = vld [vmem:[#allocation8 + $0x2c] sm:$0xf]
    %v147 = vld [vmem:[#allocation8 + $0x30] sm:$0xf]
    %v148 = vld [vmem:[#allocation8 + $0x34] sm:$0xf]
    %v149 = vld [vmem:[#allocation8 + $0x38] sm:$0xf]
    %v150 = vld [vmem:[#allocation8 + $0x3c] sm:$0xf]
    %v151 = vpack.c.bf16 %v134, %v133
    %v168 = vunpack.c.l.b16 %v135
    %v169 = vunpack.c.l.b16 %v136
    %v170 = vunpack.c.l.b16 %v137
    %v171 = vunpack.c.l.b16 %v138
    %v172 = vunpack.c.l.b16 %v139
    %v173 = vunpack.c.l.b16 %v140
    %v174 = vunpack.c.l.b16 %v141
    %v175 = vunpack.c.l.b16 %v142
    %v176 = vunpack.c.l.b16 %v143
    %v177 = vunpack.c.l.b16 %v144
    %v178 = vunpack.c.l.b16 %v145
    %v179 = vunpack.c.l.b16 %v146
    %v180 = vunpack.c.l.b16 %v147
    %v181 = vunpack.c.l.b16 %v148
    %v182 = vunpack.c.l.b16 %v149
    %v183 = vunpack.c.l.b16 %v150
    %v184 = vpack.c.b16 %v169, %v168
    %v185 = vpack.c.b16 %v171, %v170
    %v186 = vpack.c.b16 %v173, %v172
    %v187 = vpack.c.b16 %v175, %v174
    %v188 = vpack.c.b16 %v177, %v176
    %v189 = vpack.c.b16 %v179, %v178
    %v190 = vpack.c.b16 %v181, %v180
    %v191 = vpack.c.b16 %v183, %v182
    %200 = vmatprep.subr.bf16.mxu0 0
    %201 = vmatpush1.bf16.msra.mxu0 %v191
    %202 = vmatprep.subr.bf16.mxu0 0
    %203 = vmatpush1.bf16.msra.mxu0 %v190
    %204 = vmatprep.subr.bf16.mxu0 0
    %205 = vmatpush1.bf16.msra.mxu0 %v189
    %206 = vmatprep.subr.bf16.mxu0 0
    %207 = vmatpush1.bf16.msra.mxu0 %v188
    %208 = vmatprep.subr.bf16.mxu0 0
    %209 = vmatpush1.bf16.msra.mxu0 %v187
    %210 = vmatprep.subr.bf16.mxu0 0
    %211 = vmatpush1.bf16.msra.mxu0 %v186
    %212 = vmatprep.subr.bf16.mxu0 0
    %213 = vmatpush1.bf16.msra.mxu0 %v185
    %214 = vmatprep.subr.bf16.mxu0 0
    %215 = vmatpush1.bf16.msra.mxu0 %v184
    %216 = vmatprep.subr.bf16.mxu0 0
    %217 = vmatpush2.bf16.msra.mxu0 0
    %218 = vmatprep.subr.bf16.mxu0 0
    %219 = vmatpush2.bf16.msra.mxu0 0
    %220 = vmatprep.subr.bf16.mxu0 0
    %221 = vmatpush2.bf16.msra.mxu0 0
    %222 = vmatprep.subr.bf16.mxu0 0
    %223 = vmatpush2.bf16.msra.mxu0 0
    %224 = vmatprep.subr.bf16.mxu0 0
    %225 = vmatpush2.bf16.msra.mxu0 0
    %226 = vmatprep.subr.bf16.mxu0 0
    %227 = vmatpush2.bf16.msra.mxu0 0
    %228 = vmatprep.subr.bf16.mxu0 0
    %229 = vmatpush2.bf16.msra.mxu0 0
    %230 = vmatprep.subr.bf16.mxu0 0
    %231 = vmatpush2.bf16.msra.mxu0 0
    %232 = vmatprep.mubr.bf16.mxu0 0
    %233 = vmatmul.mubr.bf16.gmra.mxu0 %v151
    %v234 = vpop.f32.mrf.mxu0
    %v235 = vadd.f32 0.0, %v234
    %v236 = vpop.f32.mrf.mxu0
    %v237 = vpop.f32.mrf.mxu0
    %v238 = vadd.f32 0.0, %v237
    %v239 = vpop.f32.mrf.mxu0
    %240 = vdwg.mxu0
    %v241 = vadd.f32 %v127, %v235
    %v242 = vadd.f32 %v128, %v238
    %v243 = vmax.f32 %v241, -0.016938468
    %v244 = vmax.f32 %v242, -0.016938468
    %v245 = vmin.f32 %v243, 0.016938468
    %v246 = vmin.f32 %v244, 0.016938468
    %v247 = vsub.f32 %v241, %v245
    %v248 = vsub.f32 %v242, %v246
    %v249 = vpack.c.bf16 %v248, %v247
    %250 = vmatprep.subr.bf16.mxu0 0
    %251 = vmatpush1.bf16.msra.mxu0 %v191
    %252 = vmatprep.subr.bf16.mxu0 0
    %253 = vmatpush1.bf16.msra.mxu0 %v190
    %254 = vmatprep.subr.bf16.mxu0 0
    %255 = vmatpush1.bf16.msra.mxu0 %v189
    %256 = vmatprep.subr.bf16.mxu0 0
    %257 = vmatpush1.bf16.msra.mxu0 %v188
    %258 = vmatprep.subr.bf16.mxu0 0
    %259 = vmatpush1.bf16.msra.mxu0 %v187
    %260 = vmatprep.subr.bf16.mxu0 0
    %261 = vmatpush1.bf16.msra.mxu0 %v186
    %262 = vmatprep.subr.bf16.mxu0 0
    %263 = vmatpush1.bf16.msra.mxu0 %v185
    %264 = vmatprep.subr.bf16.mxu0 0
    %265 = vmatpush1.bf16.msra.mxu0 %v184
    %266 = vmatprep.subr.bf16.mxu0 0
    %267 = vmatpush2.bf16.msra.mxu0 0
    %268 = vmatprep.subr.bf16.mxu0 0
    %269 = vmatpush2.bf16.msra.mxu0 0
    %270 = vmatprep.subr.bf16.mxu0 0
    %271 = vmatpush2.bf16.msra.mxu0 0
    %272 = vmatprep.subr.bf16.mxu0 0
    %273 = vmatpush2.bf16.msra.mxu0 0
    %274 = vmatprep.subr.bf16.mxu0 0
    %275 = vmatpush2.bf16.msra.mxu0 0
    %276 = vmatprep.subr.bf16.mxu0 0
    %277 = vmatpush2.bf16.msra.mxu0 0
    %278 = vmatprep.subr.bf16.mxu0 0
    %279 = vmatpush2.bf16.msra.mxu0 0
    %280 = vmatprep.subr.bf16.mxu0 0
    %281 = vmatpush2.bf16.msra.mxu0 0
    %282 = vmatprep.mubr.bf16.mxu0 0
    %283 = vmatmul.mubr.bf16.gmra.mxu0 %v249
    %v284 = vpop.f32.mrf.mxu0
    %v285 = vadd.f32 0.0, %v284
    %v286 = vpop.f32.mrf.mxu0
    %v287 = vpop.f32.mrf.mxu0
    %v288 = vadd.f32 0.0, %v287
    %v289 = vpop.f32.mrf.mxu0
    %290 = vdwg.mxu0
    %v291 = vadd.f32 %v127, %v285
    %v292 = vadd.f32 %v128, %v288
    %v293 = vmax.f32 %v291, -0.016938468
    %v294 = vmax.f32 %v292, -0.016938468
    %v295 = vmin.f32 %v293, 0.016938468
    %v296 = vmin.f32 %v294, 0.016938468
    %v297 = vsub.f32 %v291, %v295
    %v298 = vsub.f32 %v292, %v296
    %v299 = vpack.c.bf16 %v298, %v297
    %300 = vmatprep.subr.bf16.mxu0 0
    %301 = vmatpush1.bf16.msra.mxu0 %v191
    %302 = vmatprep.subr.bf16.mxu0 0
    %303 = vmatpush1.bf16.msra.mxu0 %v190
    %304 = vmatprep.subr.bf16.mxu0 0
    %305 = vmatpush1.bf16.msra.mxu0 %v189
    %306 = vmatprep.subr.bf16.mxu0 0
    %307 = vmatpush1.bf16.msra.mxu0 %v188
    %308 = vmatprep.subr.bf16.mxu0 0
    %309 = vmatpush1.bf16.msra.mxu0 %v187
    %310 = vmatprep.subr.bf16.mxu0 0
    %311 = vmatpush1.bf16.msra.mxu0 %v186
    %312 = vmatprep.subr.bf16.mxu0 0
    %313 = vmatpush1.bf16.msra.mxu0 %v185
    %314 = vmatprep.subr.bf16.mxu0 0
    %315 = vmatpush1.bf16.msra.mxu0 %v184
    %316 = vmatprep.subr.bf16.mxu0 0
    %317 = vmatpush2.bf16.msra.mxu0 0
    %318 = vmatprep.subr.bf16.mxu0 0
    %319 = vmatpush2.bf16.msra.mxu0 0
    %320 = vmatprep.subr.bf16.mxu0 0
    %321 = vmatpush2.bf16.msra.mxu0 0
    %322 = vmatprep.subr.bf16.mxu0 0
    %323 = vmatpush2.bf16.msra.mxu0 0
    %324 = vmatprep.subr.bf16.mxu0 0
    %325 = vmatpush2.bf16.msra.mxu0 0
    %326 = vmatprep.subr.bf16.mxu0 0
    %327 = vmatpush2.bf16.msra.mxu0 0
    %328 = vmatprep.subr.bf16.mxu0 0
    %329 = vmatpush2.bf16.msra.mxu0 0
    %330 = vmatprep.subr.bf16.mxu0 0
    %331 = vmatpush2.bf16.msra.mxu0 0
    %332 = vmatprep.mubr.bf16.mxu0 0
    %333 = vmatmul.mubr.bf16.gmra.mxu0 %v299
    %v334 = vpop.f32.mrf.mxu0
    %v335 = vadd.f32 0.0, %v334
    %v336 = vpop.f32.mrf.mxu0
    %v337 = vpop.f32.mrf.mxu0
    %v338 = vadd.f32 0.0, %v337
    %v339 = vpop.f32.mrf.mxu0
    %340 = vdwg.mxu0
    %v341 = vadd.f32 %v127, %v335
    %v342 = vadd.f32 %v128, %v338
    %v343 = vmax.f32 %v341, -0.016938468
    %v344 = vmax.f32 %v342, -0.016938468
    %v345 = vmin.f32 %v343, 0.016938468
    %v346 = vmin.f32 %v344, 0.016938468
    %v347 = vsub.f32 %v341, %v345
    %v348 = vsub.f32 %v342, %v346
    %349 = vst [vmem:[#allocation9] sm:$0xff] %v347
    %350 = vst [vmem:[#allocation9 + $0x8] sm:$0xff] %v348
    // Predicated region
    $region26: #{tpu_custom_call.1} parent=1 // pred_check
      _
    $region27: #{tpu_custom_call.1} parent=1 // pred_check_branch
      %352 = sbr.rel (0) target = $region29
    $region28: #{tpu_custom_call.1} parent=1 // pred_region
      %s354 = ssub.s32 256, 256
      %355 = vsyncadd [#allocation5], %s354
      %s356 = sshll.u32 [#allocation9], 4
      %s357 = int_to_ptr.vmem [resolvable:$true] %s356
      %362 = dma.vmem_to_hbm [thread:$0]  %s357, 256, %s3, [#allocation5], 128, 128, 8
    $region29: #{tpu_custom_call.1} parent=1 // pred_fallthru
      _
    // Predicated region
    $region30: #{tpu_custom_call.1} parent=1 // pred_check
      _
    $region31: #{tpu_custom_call.1} parent=1 // pred_check_branch
      %364 = sbr.rel (0) target = $region33
    $region32: #{tpu_custom_call.1} parent=1 // pred_region
      %365 = dma.done [#allocation5], 256
    $region33: #{tpu_custom_call.1} parent=1 // pred_fallthru
      _
    %366 = vsyncpa [#allocation4], 1
    %367 = vsyncpa [#allocation7], 1
    %368 = vsyncpa [#allocation5], 1

</llo_original>
